<compile_context>
chip_gen: v7x
topology: tpu7x:2x2x1
jax: 0.10.0
libtpu: 0.0.40
codegen_flags: <defaults>
</compile_context>

<pallas_src>
import numpy as np

import jax
import jax.numpy as jnp
from jax.experimental import pallas as pl
from jax.experimental.pallas import tpu as pltpu


def _round_up(x, m):
    return ((x + m - 1) // m) * m


def _pick_batch_tile(batch, requested=256, min_steps=4):
    """Batch tile: multiple of 8, ~`requested` rows/step, but keep >= min_steps
    grid steps when the batch allows it (v7x megacore + pipeline overlap)."""
    if batch >= 8 * min_steps:
        cap = (batch // min_steps) // 8 * 8
    else:
        cap = 8
    return max(8, min(max(8, requested // 8 * 8), cap))


def textcnn_kernel(unf_ref, wc_ref, bc_ref, mask_ref, dw_ref, db_ref, out_ref):
    bt, tp, ke = unf_ref.shape                         # static block shape

    # One fused conv matmul for all three branches:
    #   unf[b, t, j*E + e] = x[b, t+j, e]   (zeros where t+j is out of range)
    #   wc[j*E + e, c]     = conv-weight of channel c's branch (zero rows for
    #                        taps beyond that branch's kernel size)
    unf2d = unf_ref[...].reshape(bt * tp, ke)          # bf16, tile-aligned merge
    acc = jnp.dot(unf2d, wc_ref[...],
                  preferred_element_type=jnp.float32)  # (bt*tp, 128) f32
    acc = acc.reshape(bt, tp, acc.shape[-1])           # (bt, tp, 128)

    # Mask conv positions that don't exist for a channel's kernel size (and the
    # Tp padding rows) before the time max, then bias + ReLU after the max
    # (bias is time-constant, ReLU monotone -> identical to conv+bias->ReLU->pool).
    acc = acc + mask_ref[...][None, :, :]
    pooled = jnp.max(acc, axis=1) + bc_ref[...]        # (bt, 128) f32
    feat = jnp.maximum(pooled, 0.0)

    # TODO(synk): nn.Dropout(0.5) is identity at inference; training-mode
    # dropout is not applied here.
    logits = jnp.dot(feat.astype(jnp.bfloat16), dw_ref[...],
                     preferred_element_type=jnp.float32) + db_ref[...]
    out_ref[...] = logits                              # (bt, 128) lane-dense


def textcnn_forward(input_ids, aspect_token_id, embedding_matrix,
                    conv_ws, conv_bs, dec_w, dec_b, kernel_sizes,
                    *, batch_tile=256, vmem_limit_bytes=None):
    kernel_sizes = tuple(int(k) for k in kernel_sizes)
    k_max = max(kernel_sizes)

    # TODO(synk): the embedding gather (and the one-time im2col below) are left
    # as XLA glue; fusing the gather in-kernel via scalar-prefetched ids would
    # save one HBM round trip of the activation.
    input_x = embedding_matrix[input_ids]                         # (B, L, E)
    aspect_x = embedding_matrix[aspect_token_id]                  # (B, E)
    x = jnp.concatenate([input_x, aspect_x[:, None, :]], axis=1)  # (B, T, E)
    B, T, E = x.shape
    x = x.astype(jnp.bfloat16)

    # ---- shared im2col for the largest kernel size (done once, wrapper side) --
    Tp = _round_up(T, 16)                    # conv positions, padded for bf16 tiles
    KE = k_max * E
    KE_pad = _round_up(KE, 128)              # lane-dense K
    x_pad = jnp.pad(x, ((0, 0), (0, (Tp - T) + (k_max - 1)), (0, 0)))
    unf = jnp.concatenate([x_pad[:, j:j + Tp, :] for j in range(k_max)], axis=-1)
    if KE_pad != KE:
        unf = jnp.pad(unf, ((0, 0), (0, 0), (0, KE_pad - KE)))
    # unf[b, t, j*E + e] = x[b, t+j, e]  (zeros where t+j >= T or t >= T)

    # ---- batch tiling ---------------------------------------------------------
    bt = _pick_batch_tile(B, requested=batch_tile)
    b_pad = pl.cdiv(B, bt) * bt
    if b_pad != B:
        unf = jnp.pad(unf, ((0, b_pad - B), (0, 0), (0, 0)))

    # ---- fused conv weight / bias / time-validity mask ------------------------
    C_PAD = 128                              # lane-dense pooled feature width
    num_channels = [int(w.shape[2]) for w in conv_ws]
    c_total = sum(num_channels)
    wc = jnp.zeros((KE_pad, C_PAD), jnp.float32)
    bc = jnp.zeros((1, C_PAD), jnp.float32)
    valid_len = np.full((C_PAD,), Tp, np.int32)
    col = 0
    for w, b, k, c in zip(conv_ws, conv_bs, kernel_sizes, num_channels):
        wc = wc.at[:k * E, col:col + c].set(w.reshape(k * E, c).astype(jnp.float32))
        bc = bc.at[0, col:col + c].set(b.reshape(c).astype(jnp.float32))
        valid_len[col:col + c] = T - k + 1   # valid conv output positions
        col += c
    wc = wc.astype(jnp.bfloat16)
    mask = jnp.asarray(
        np.where(np.arange(Tp)[:, None] < valid_len[None, :], 0.0, -1e30),
        dtype=jnp.float32)                                  # (Tp, C_PAD)

    # ---- lane-dense decoder (3 real columns, padded to 128) -------------------
    n_out = dec_w.shape[1]
    N_PAD = 128
    dw = jnp.zeros((C_PAD, N_PAD), jnp.float32).at[:c_total, :n_out].set(
        dec_w.astype(jnp.float32)).astype(jnp.bfloat16)
    db = jnp.zeros((1, N_PAD), jnp.float32).at[0, :n_out].set(
        dec_b.reshape(n_out).astype(jnp.float32))

    bcast2 = lambda b: (0, 0)
    cp_kwargs = dict(dimension_semantics=("parallel",))
    if vmem_limit_bytes is not None:
        # (e.g. raise v5e's 16 MiB scoped default when batch_tile is very large)
        cp_kwargs["vmem_limit_bytes"] = vmem_limit_bytes

    out_padded = pl.pallas_call(
        textcnn_kernel,
        out_shape=jax.ShapeDtypeStruct((b_pad, N_PAD), jnp.float32),
        grid=(b_pad // bt,),
        in_specs=[
            pl.BlockSpec((bt, Tp, KE_pad), lambda b: (b, 0, 0)),  # unfolded x (tiled)
            pl.BlockSpec(wc.shape, bcast2),                       # resident weights
            pl.BlockSpec(bc.shape, bcast2),
            pl.BlockSpec(mask.shape, bcast2),
            pl.BlockSpec(dw.shape, bcast2),
            pl.BlockSpec(db.shape, bcast2),
        ],
        out_specs=pl.BlockSpec((bt, N_PAD), lambda b: (b, 0)),
        compiler_params=pltpu.CompilerParams(**cp_kwargs),
    )(unf, wc, bc, mask, dw, db)
    return out_padded[:B, :n_out]


def reference_forward(input_ids, aspect_token_id, embedding_matrix,
                      conv_ws, conv_bs, dec_w, dec_b, kernel_sizes):
    """Pure-JAX reference mirroring the kernel's bf16 operand quantization."""
    input_x = embedding_matrix[input_ids]
    aspect_x = embedding_matrix[aspect_token_id]
    x = jnp.concatenate([input_x, aspect_x[:, None, :]], axis=1)
    x = x.astype(jnp.bfloat16).astype(jnp.float32)
    feats = []
    for w, b, k in zip(conv_ws, conv_bs, kernel_sizes):
        wq = w.astype(jnp.bfloat16).astype(jnp.float32)          # (k, E, C)
        t_out = x.shape[1] - k + 1
        acc = sum(jnp.einsum('bte,ec->btc', x[:, j:j + t_out, :], wq[j])
                  for j in range(k))
        pooled = jnp.max(acc, axis=1) + b.reshape(1, -1)
        feats.append(jnp.maximum(pooled, 0.0))
    enc = jnp.concatenate(feats, axis=1)
    encq = enc.astype(jnp.bfloat16).astype(jnp.float32)
    dwq = dec_w.astype(jnp.bfloat16).astype(jnp.float32)
    return encq @ dwq + dec_b.reshape(1, -1)


if __name__ == "__main__":
    key = jax.random.PRNGKey(0)
    vocab, E = 64, 32
    B, L = 64, 15                      # seq len 15 (+1 aspect token -> T=16)
    kernel_sizes = (2, 3, 4)           # conv output lengths 15, 14, 13
    num_channels = (16, 16, 16)        # sum = 48 -> decoder Linear(48, 3)

    keys = jax.random.split(key, 12)
    embedding_matrix = jax.random.normal(keys[0], (vocab, E), jnp.float32)
    conv_ws = [jax.random.normal(keys[1 + i], (k, E, c), jnp.float32) * 0.1
               for i, (k, c) in enumerate(zip(kernel_sizes, num_channels))]
    conv_bs = [jax.random.normal(keys[4 + i], (1, c), jnp.float32) * 0.1
               for i, c in enumerate(num_channels)]
    dec_w = jax.random.normal(keys[7], (sum(num_channels), 3), jnp.float32) * 0.1
    dec_b = jax.random.normal(keys[8], (3,), jnp.float32) * 0.1

    input_ids = jax.random.randint(keys[9], (B, L), 0, vocab)
    aspect_token_id = jax.random.randint(keys[10], (B,), 0, vocab)

    out = textcnn_forward(input_ids, aspect_token_id, embedding_matrix,
                          conv_ws, conv_bs, dec_w, dec_b, kernel_sizes)
    out = jax.block_until_ready(out)

    ref = reference_forward(input_ids, aspect_token_id, embedding_matrix,
                            conv_ws, conv_bs, dec_w, dec_b, kernel_sizes)

    assert out.shape == (B, 3) and out.dtype == jnp.float32
    assert bool(jnp.all(jnp.isfinite(out)))
    assert bool(jnp.allclose(out, ref, atol=5e-2, rtol=5e-2)), \
        f"max abs diff {float(jnp.max(jnp.abs(out - ref)))}"
    print("KERNEL_OK")
</pallas_src>

<mosaic_0001>
module attributes {stable_mosaic.version = 11 : i64} {
  func.func @textcnn_kernel(%arg0: i32, %arg1: memref<16x16x128xbf16, #tpu.memory_space<vmem>>, %arg2: memref<128x128xbf16, #tpu.memory_space<vmem>>, %arg3: memref<1x128xf32, #tpu.memory_space<vmem>>, %arg4: memref<16x128xf32, #tpu.memory_space<vmem>>, %arg5: memref<128x128xbf16, #tpu.memory_space<vmem>>, %arg6: memref<1x128xf32, #tpu.memory_space<vmem>>, %arg7: memref<16x128xf32, #tpu.memory_space<vmem>>) attributes {dimension_semantics = [#tpu.dimension_semantics<parallel>], iteration_bounds = array<i64: 4>, scalar_prefetch = 0 : i64, scratch_operands = 0 : i64, tpu.core_type = #tpu.core_type<tc>, window_params = [{transform_indices = @transform_0, window_bounds = array<i64: 16, 16, 128>}, {pipeline_mode = #tpu.pipeline_mode<synchronous>, transform_indices = @transform_1, window_bounds = array<i64: 128, 128>}, {pipeline_mode = #tpu.pipeline_mode<synchronous>, transform_indices = @transform_2, window_bounds = array<i64: 1, 128>}, {pipeline_mode = #tpu.pipeline_mode<synchronous>, transform_indices = @transform_3, window_bounds = array<i64: 16, 128>}, {pipeline_mode = #tpu.pipeline_mode<synchronous>, transform_indices = @transform_4, window_bounds = array<i64: 128, 128>}, {pipeline_mode = #tpu.pipeline_mode<synchronous>, transform_indices = @transform_5, window_bounds = array<i64: 1, 128>}, {transform_indices = @transform_6, window_bounds = array<i64: 16, 128>}]} {
    %c0 = arith.constant 0 : index
    %c0_0 = arith.constant 0 : index
    %c0_1 = arith.constant 0 : index
    %0 = vector.load %arg1[%c0, %c0_0, %c0_1] : memref<16x16x128xbf16, #tpu.memory_space<vmem>>, vector<16x16x128xbf16>
    %1 = vector.shape_cast %0 : vector<16x16x128xbf16> to vector<256x128xbf16>
    %c0_2 = arith.constant 0 : index
    %c0_3 = arith.constant 0 : index
    %2 = vector.load %arg2[%c0_2, %c0_3] : memref<128x128xbf16, #tpu.memory_space<vmem>>, vector<128x128xbf16>
    %cst = arith.constant dense<0.000000e+00> : vector<256x128xf32>
    %3 = tpu.matmul %1, %2, %cst {dimension_numbers = #tpu.dot_dimension_numbers<[1], [0], [0], [1], [0, 0, 1, 1], [], []>} : vector<256x128xbf16>, vector<128x128xbf16>, vector<256x128xf32> -> vector<256x128xf32>
    %4 = vector.shape_cast %3 : vector<256x128xf32> to vector<16x16x128xf32>
    %c0_4 = arith.constant 0 : index
    %c0_5 = arith.constant 0 : index
    %5 = vector.load %arg4[%c0_4, %c0_5] : memref<16x128xf32, #tpu.memory_space<vmem>>, vector<16x128xf32>
    %6 = vector.shape_cast %5 : vector<16x128xf32> to vector<1x16x128xf32>
    %7 = vector.broadcast %6 : vector<1x16x128xf32> to vector<16x16x128xf32>
    %8 = arith.addf %4, %7 : vector<16x16x128xf32>
    %cst_6 = arith.constant dense<0xFF800000> : vector<16x128xf32>
    %9 = vector.multi_reduction <maximumf>, %8, %cst_6 [1] : vector<16x16x128xf32> to vector<16x128xf32>
    %c0_7 = arith.constant 0 : index
    %c0_8 = arith.constant 0 : index
    %10 = vector.load %arg3[%c0_7, %c0_8] : memref<1x128xf32, #tpu.memory_space<vmem>>, vector<1x128xf32>
    %11 = vector.broadcast %10 : vector<1x128xf32> to vector<16x128xf32>
    %12 = arith.addf %9, %11 : vector<16x128xf32>
    %cst_9 = arith.constant 0.000000e+00 : f32
    %13 = vector.broadcast %cst_9 : f32 to vector<16x128xf32>
    %14 = arith.maximumf %12, %13 : vector<16x128xf32>
    %15 = arith.truncf %14 : vector<16x128xf32> to vector<16x128xbf16>
    %c0_10 = arith.constant 0 : index
    %c0_11 = arith.constant 0 : index
    %16 = vector.load %arg5[%c0_10, %c0_11] : memref<128x128xbf16, #tpu.memory_space<vmem>>, vector<128x128xbf16>
    %cst_12 = arith.constant dense<0.000000e+00> : vector<16x128xf32>
    %17 = tpu.matmul %15, %16, %cst_12 {dimension_numbers = #tpu.dot_dimension_numbers<[1], [0], [0], [1], [0, 0, 1, 1], [], []>} : vector<16x128xbf16>, vector<128x128xbf16>, vector<16x128xf32> -> vector<16x128xf32>
    %c0_13 = arith.constant 0 : index
    %c0_14 = arith.constant 0 : index
    %18 = vector.load %arg6[%c0_13, %c0_14] : memref<1x128xf32, #tpu.memory_space<vmem>>, vector<1x128xf32>
    %19 = vector.broadcast %18 : vector<1x128xf32> to vector<16x128xf32>
    %20 = arith.addf %17, %19 : vector<16x128xf32>
    %c0_15 = arith.constant 0 : index
    %c0_16 = arith.constant 0 : index
    %21 = vector.load %arg7[%c0_15, %c0_16] : memref<16x128xf32, #tpu.memory_space<vmem>>, vector<16x128xf32>
    tpu.vector_store %arg7[%c0_15, %c0_16], %20 {strides = array<i32>} : memref<16x128xf32, #tpu.memory_space<vmem>>, vector<16x128xf32>,
    return
  }
  func.func @transform_0(%arg0: i32) -> (i32, i32, i32) {
    %c0_i32 = arith.constant 0 : i32
    %c0_i32_0 = arith.constant 0 : i32
    %c0_i32_1 = arith.constant 0 : i32
    return %arg0, %c0_i32, %c0_i32_0 : i32, i32, i32
  }
  func.func @transform_1(%arg0: i32) -> (i32, i32) {
    %c0_i32 = arith.constant 0 : i32
    %c0_i32_0 = arith.constant 0 : i32
    %c0_i32_1 = arith.constant 0 : i32
    return %c0_i32, %c0_i32_0 : i32, i32
  }
  func.func @transform_2(%arg0: i32) -> (i32, i32) {
    %c0_i32 = arith.constant 0 : i32
    %c0_i32_0 = arith.constant 0 : i32
    %c0_i32_1 = arith.constant 0 : i32
    return %c0_i32, %c0_i32_0 : i32, i32
  }
  func.func @transform_3(%arg0: i32) -> (i32, i32) {
    %c0_i32 = arith.constant 0 : i32
    %c0_i32_0 = arith.constant 0 : i32
    %c0_i32_1 = arith.constant 0 : i32
    return %c0_i32, %c0_i32_0 : i32, i32
  }
  func.func @transform_4(%arg0: i32) -> (i32, i32) {
    %c0_i32 = arith.constant 0 : i32
    %c0_i32_0 = arith.constant 0 : i32
    %c0_i32_1 = arith.constant 0 : i32
    return %c0_i32, %c0_i32_0 : i32, i32
  }
  func.func @transform_5(%arg0: i32) -> (i32, i32) {
    %c0_i32 = arith.constant 0 : i32
    %c0_i32_0 = arith.constant 0 : i32
    %c0_i32_1 = arith.constant 0 : i32
    return %c0_i32, %c0_i32_0 : i32, i32
  }
  func.func @transform_6(%arg0: i32) -> (i32, i32) {
    %c0_i32 = arith.constant 0 : i32
    %c0_i32_0 = arith.constant 0 : i32
    return %arg0, %c0_i32 : i32, i32
  }
}

</mosaic_0001>

<llo_original>
// kernel: tpu_custom_call.1
$region0: #{tpu_custom_call.1}
  #allocation0 [shape = 'u32[]', space=smem, size = 0x4, offset = 0x4, fixed_abs, tag = 'smem constant byte address 0x4 - core index']
  #allocation1 [shape = 'u32[144,128]{1,0:T(1,128)}', space=vmem, size = 0x12000, scoped, tag = 'internal scratch']
  %s0 = inlined_call_operand.hbm [shape: bf16[64,16,128], index: 0, kind: input, shape index: {}]
  %s1 = inlined_call_operand.hbm [shape: bf16[128,128], index: 1, kind: input, shape index: {}]
  %s2 = inlined_call_operand.vmem [shape: f32[1,128], index: 2, kind: input, shape index: {}]
  %s3 = inlined_call_operand.hbm [shape: f32[16,128], index: 3, kind: input, shape index: {}]
  %s4 = inlined_call_operand.hbm [shape: bf16[128,128], index: 4, kind: input, shape index: {}]
  %s5 = inlined_call_operand.vmem [shape: f32[1,128], index: 5, kind: input, shape index: {}]
  %s6 = inlined_call_operand.hbm [shape: f32[64,128], index: 6, kind: output, shape index: {}]
  %s7 = sld [smem:[#allocation0]]
  $region73: #{tpu_custom_call.1} parent=0
    _
  %s9 = ssub.s32 1, %s7
  %s10 = scalar_select 0, %s9, %s7
  $region1: #{tpu_custom_call.1} parent=0
    #allocation2 [shape = 'u8[131072]{0}', space=vmem, size = 0x20000, scoped, tag = 'input window, operand 0']
    #allocation3 [shape = 's32[2]{0}', space=sflag, size = 0x8, scoped, tag = 'scoped memory for tpu_custom_call.1']
    #allocation4 [shape = 's32[2]{0}', space=sflag, size = 0x8, scoped, tag = 'scoped memory for tpu_custom_call.1']
    #allocation5 [shape = 'u8[32768]{0}', space=vmem, size = 0x8000, scoped, tag = 'input window, operand 1, single buffered']
    #allocation6 [shape = 's32[1]{0}', space=sflag, size = 0x4, scoped, tag = 'scoped memory for tpu_custom_call.1']
    #allocation7 [shape = 'u8[8192]{0}', space=vmem, size = 0x2000, scoped, tag = 'input window, operand 3, single buffered']
    #allocation8 [shape = 'u8[32768]{0}', space=vmem, size = 0x8000, scoped, tag = 'input window, operand 4, single buffered']
    #allocation9 [shape = 's32[1]{0}', space=sflag, size = 0x4, scoped, tag = 'scoped memory for tpu_custom_call.1']
    #allocation10 [shape = 'u8[16384]{0}', space=vmem, size = 0x4000, scoped, tag = 'output window, operand 0']
    %11 = vsyncpa [#allocation3], 0
    %s12 = scalar_lea.sflag [#allocation3], 1
    %13 = vsyncpa %s12, 0
    %14 = vsyncpa [#allocation6], 0
    %15 = vsyncpa [#allocation9], 0
    %16 = vsyncpa [#allocation4], 0
    %s17 = scalar_lea.sflag [#allocation4], 1
    %18 = vsyncpa %s17, 0
    loop: start=0, step=1, limit=6
    $region2: #{tpu_custom_call.1} parent=1 // loop_pre_header
      _
    $region3: #{tpu_custom_call.1} parent=1 // loop_header
      %s20 = sphi 0, %s24
      %p21 = scmp.ge.s32.totalorder %s20, 6
      %s30 = sphi 0, %s32
      %s33 = sphi 0, %s30
      %s34 = sphi 0, %s33
      %s50 = sphi 0, %s34
      %s54 = sphi 0, %s54
      %s56 = sphi 0, %s54
      %s57 = sphi 0, %s56
      %s71 = sphi 0, %s57
      %s75 = sphi 0, %s75
      %s77 = sphi 0, %s75
      %s78 = sphi 0, %s77
      %s92 = sphi 0, %s78
      %s96 = sphi 0, %s96
      %s98 = sphi 0, %s96
      %s99 = sphi 0, %s98
      %s113 = sphi 0, %s99
      %s117 = sphi 0, %s117
      %s119 = sphi 0, %s117
      %s120 = sphi 0, %s119
      %s134 = sphi 0, %s120
      %s138 = sphi 0, %s138
      %s140 = sphi 0, %s138
      %s141 = sphi 0, %s140
      %s155 = sphi 0, %s141
      %s161 = sphi 0, %s163
      %s164 = sphi 0, %s161
      %s165 = sphi 0, %s164
      %s181 = sphi 0, %s165
    $region4: #{tpu_custom_call.1} parent=1 // loop_header_branch
      %23 = sbr.rel (%p21) target = $region8
    $region5: #{tpu_custom_call.1} parent=1 // loop_body
      %s25 = ssub.s32 %s20, 1
      %s26 = ssub.s32 %s20, 2
      %s27 = sadd.s32 %s20, 1
      %s28 = ssub.s32 %s20, %s27
      %p29 = scmp.eq.s32.totalorder %s28, 0
      %s31 = sadd.s32 %s30, 1
      %s32 = scalar_select %p29, %s30, %s31
      %p35 = pneg %p29
      %p36 = scmp.eq.s32.totalorder %s20, 3
      %p37 = por %p35, %p36
      %p38 = scmp.ne.s32.totalorder %s30, %s33
      %p39 = scmp.eq.s32.totalorder %s20, 0
      %p40 = por %p38, %p39
      %p41 = scmp.ne.s32.totalorder %s30, %s33
      %p42 = scmp.eq.s32.totalorder %s25, 3
      %p43 = por %p41, %p42
      %p44 = scmp.ne.s32.totalorder %s33, %s34
      %p45 = scmp.eq.s32.totalorder %s25, 0
      %p46 = por %p44, %p45
      %p47 = scmp.ne.s32.totalorder %s33, %s34
      %p48 = scmp.eq.s32.totalorder %s26, 3
      %p49 = por %p47, %p48
      %p51 = scmp.ne.s32.totalorder %s34, %s50
      %p52 = scmp.eq.s32.totalorder %s26, 0
      %p53 = por %p51, %p52
      %s55 = sadd.s32 %s54, 1
      %p58 = scmp.eq.s32.totalorder %s20, 3
      %p59 = scmp.ne.s32.totalorder %s54, %s56
      %p60 = scmp.eq.s32.totalorder %s20, 0
      %p61 = por %p59, %p60
      %p62 = scmp.ne.s32.totalorder %s54, %s56
      %p63 = scmp.eq.s32.totalorder %s25, 3
      %p64 = por %p62, %p63
      %p65 = scmp.ne.s32.totalorder %s56, %s57
      %p66 = scmp.eq.s32.totalorder %s25, 0
      %p67 = por %p65, %p66
      %p68 = scmp.ne.s32.totalorder %s56, %s57
      %p69 = scmp.eq.s32.totalorder %s26, 3
      %p70 = por %p68, %p69
      %p72 = scmp.ne.s32.totalorder %s57, %s71
      %p73 = scmp.eq.s32.totalorder %s26, 0
      %p74 = por %p72, %p73
      %s76 = sadd.s32 %s75, 1
      %p79 = scmp.eq.s32.totalorder %s20, 3
      %p80 = scmp.ne.s32.totalorder %s75, %s77
      %p81 = scmp.eq.s32.totalorder %s20, 0
      %p82 = por %p80, %p81
      %p83 = scmp.ne.s32.totalorder %s75, %s77
      %p84 = scmp.eq.s32.totalorder %s25, 3
      %p85 = por %p83, %p84
      %p86 = scmp.ne.s32.totalorder %s77, %s78
      %p87 = scmp.eq.s32.totalorder %s25, 0
      %p88 = por %p86, %p87
      %p89 = scmp.ne.s32.totalorder %s77, %s78
      %p90 = scmp.eq.s32.totalorder %s26, 3
      %p91 = por %p89, %p90
      %p93 = scmp.ne.s32.totalorder %s78, %s92
      %p94 = scmp.eq.s32.totalorder %s26, 0
      %p95 = por %p93, %p94
      %s97 = sadd.s32 %s96, 1
      %p100 = scmp.eq.s32.totalorder %s20, 3
      %p101 = scmp.ne.s32.totalorder %s96, %s98
      %p102 = scmp.eq.s32.totalorder %s20, 0
      %p103 = por %p101, %p102
      %p104 = scmp.ne.s32.totalorder %s96, %s98
      %p105 = scmp.eq.s32.totalorder %s25, 3
      %p106 = por %p104, %p105
      %p107 = scmp.ne.s32.totalorder %s98, %s99
      %p108 = scmp.eq.s32.totalorder %s25, 0
      %p109 = por %p107, %p108
      %p110 = scmp.ne.s32.totalorder %s98, %s99
      %p111 = scmp.eq.s32.totalorder %s26, 3
      %p112 = por %p110, %p111
      %p114 = scmp.ne.s32.totalorder %s99, %s113
      %p115 = scmp.eq.s32.totalorder %s26, 0
      %p116 = por %p114, %p115
      %s118 = sadd.s32 %s117, 1
      %p121 = scmp.eq.s32.totalorder %s20, 3
      %p122 = scmp.ne.s32.totalorder %s117, %s119
      %p123 = scmp.eq.s32.totalorder %s20, 0
      %p124 = por %p122, %p123
      %p125 = scmp.ne.s32.totalorder %s117, %s119
      %p126 = scmp.eq.s32.totalorder %s25, 3
      %p127 = por %p125, %p126
      %p128 = scmp.ne.s32.totalorder %s119, %s120
      %p129 = scmp.eq.s32.totalorder %s25, 0
      %p130 = por %p128, %p129
      %p131 = scmp.ne.s32.totalorder %s119, %s120
      %p132 = scmp.eq.s32.totalorder %s26, 3
      %p133 = por %p131, %p132
      %p135 = scmp.ne.s32.totalorder %s120, %s134
      %p136 = scmp.eq.s32.totalorder %s26, 0
      %p137 = por %p135, %p136
      %s139 = sadd.s32 %s138, 1
      %p142 = scmp.eq.s32.totalorder %s20, 3
      %p143 = scmp.ne.s32.totalorder %s138, %s140
      %p144 = scmp.eq.s32.totalorder %s20, 0
      %p145 = por %p143, %p144
      %p146 = scmp.ne.s32.totalorder %s138, %s140
      %p147 = scmp.eq.s32.totalorder %s25, 3
      %p148 = por %p146, %p147
      %p149 = scmp.ne.s32.totalorder %s140, %s141
      %p150 = scmp.eq.s32.totalorder %s25, 0
      %p151 = por %p149, %p150
      %p152 = scmp.ne.s32.totalorder %s140, %s141
      %p153 = scmp.eq.s32.totalorder %s26, 3
      %p154 = por %p152, %p153
      %p156 = scmp.ne.s32.totalorder %s141, %s155
      %p157 = scmp.eq.s32.totalorder %s26, 0
      %p158 = por %p156, %p157
      %s159 = ssub.s32 %s20, %s27
      %p160 = scmp.eq.s32.totalorder %s159, 0
      %s162 = sadd.s32 %s161, 1
      %s163 = scalar_select %p160, %s161, %s162
      %p166 = pneg %p160
      %p167 = scmp.eq.s32.totalorder %s20, 3
      %p168 = por %p166, %p167
      %p169 = scmp.ne.s32.totalorder %s161, %s164
      %p170 = scmp.eq.s32.totalorder %s20, 0
      %p171 = por %p169, %p170
      %p172 = scmp.ne.s32.totalorder %s161, %s164
      %p173 = scmp.eq.s32.totalorder %s25, 3
      %p174 = por %p172, %p173
      %p175 = scmp.ne.s32.totalorder %s164, %s165
      %p176 = scmp.eq.s32.totalorder %s25, 0
      %p177 = por %p175, %p176
      %p178 = scmp.ne.s32.totalorder %s164, %s165
      %p179 = scmp.eq.s32.totalorder %s26, 3
      %p180 = por %p178, %p179
      %p182 = scmp.ne.s32.totalorder %s165, %s181
      %p183 = scmp.eq.s32.totalorder %s26, 0
      %p184 = por %p182, %p183
      %p185 = scmp.le.s32.totalorder 1, %s20
      %p186 = scmp.lt.s32.totalorder %s20, 5
      %p187 = pnand %p185, %p186
      %p188 = pneg %p187
      // Predicated region
      $region9: #{tpu_custom_call.1} parent=5 // pred_check
        _
      $region10: #{tpu_custom_call.1} parent=5 // pred_check_branch
        %190 = sbr.rel (%p187) target = $region12
      $region11: #{tpu_custom_call.1} parent=5 // pred_region
        %s191 = ssub.s32 %s20, 1
        // Predicated region
        $region13: #{tpu_custom_call.1} parent=11 // pred_check
          %p192 = pneg %p67
        $region14: #{tpu_custom_call.1} parent=11 // pred_check_branch
          %194 = sbr.rel (%p192) target = $region16
        $region15: #{tpu_custom_call.1} parent=11 // pred_region
          %s196 = ssub.s32 1024, 1024
          %197 = vsyncadd [#allocation6], %s196
          %s198 = sshll.u32 [#allocation5], 4
          %s199 = int_to_ptr.vmem [resolvable:$true] %s198
          %204 = dma.hbm_to_vmem [thread:$0]  %s1, 1024, %s199, [#allocation6], 64, 64, 4
        $region16: #{tpu_custom_call.1} parent=11 // pred_fallthru
          _
        // Predicated region
        $region17: #{tpu_custom_call.1} parent=11 // pred_check
          %p205 = pneg %p88
        $region18: #{tpu_custom_call.1} parent=11 // pred_check_branch
          %207 = sbr.rel (%p205) target = $region20
        $region19: #{tpu_custom_call.1} parent=11 // pred_region
          _
        $region20: #{tpu_custom_call.1} parent=11 // pred_fallthru
          _
        // Predicated region
        $region21: #{tpu_custom_call.1} parent=11 // pred_check
          %p208 = pneg %p109
        $region22: #{tpu_custom_call.1} parent=11 // pred_check_branch
          %210 = sbr.rel (%p208) target = $region24
        $region23: #{tpu_custom_call.1} parent=11 // pred_region
          %s212 = ssub.s32 256, 256
          %213 = vsyncadd [#allocation6], %s212
          %s214 = sshll.u32 [#allocation7], 4
          %s215 = int_to_ptr.vmem [resolvable:$true] %s214
          %220 = dma.hbm_to_vmem [thread:$0]  %s3, 256, %s215, [#allocation6], 128, 128, 8
        $region24: #{tpu_custom_call.1} parent=11 // pred_fallthru
          _
        // Predicated region
        $region25: #{tpu_custom_call.1} parent=11 // pred_check
          %p221 = pneg %p130
        $region26: #{tpu_custom_call.1} parent=11 // pred_check_branch
          %223 = sbr.rel (%p221) target = $region28
        $region27: #{tpu_custom_call.1} parent=11 // pred_region
          %s225 = ssub.s32 1024, 1024
          %226 = vsyncadd [#allocation9], %s225
          %s227 = sshll.u32 [#allocation8], 4
          %s228 = int_to_ptr.vmem [resolvable:$true] %s227
          %233 = dma.hbm_to_vmem [thread:$0]  %s4, 1024, %s228, [#allocation9], 64, 64, 4
        $region28: #{tpu_custom_call.1} parent=11 // pred_fallthru
          _
        // Predicated region
        $region29: #{tpu_custom_call.1} parent=11 // pred_check
          %p234 = pneg %p151
        $region30: #{tpu_custom_call.1} parent=11 // pred_check_branch
          %236 = sbr.rel (%p234) target = $region32
        $region31: #{tpu_custom_call.1} parent=11 // pred_region
          _
        $region32: #{tpu_custom_call.1} parent=11 // pred_fallthru
          _
      $region12: #{tpu_custom_call.1} parent=5 // pred_fallthru
        _
      %p237 = scmp.lt.s32.totalorder %s20, 4
      // Predicated region
      $region33: #{tpu_custom_call.1} parent=5 // pred_check
        %p238 = pneg %p237
      $region34: #{tpu_custom_call.1} parent=5 // pred_check_branch
        %240 = sbr.rel (%p238) target = $region36
      $region35: #{tpu_custom_call.1} parent=5 // pred_region
        // Predicated region
        $region37: #{tpu_custom_call.1} parent=35 // pred_check
          %p241 = pneg %p40
        $region38: #{tpu_custom_call.1} parent=35 // pred_check_branch
          %243 = sbr.rel (%p241) target = $region40
        $region39: #{tpu_custom_call.1} parent=35 // pred_region
          %s244 = sand.u32 %s30, 1
          %s245 = scalar_lea.sflag [#allocation3], %s244
          %s246 = sand.u32 %s30, 1
          %s247 = smul.addr %s246, 128
          %s248 = scalar_lea.vmem [#allocation2], %s247
          %s249 = smul.u32 16, %s20
          %s251 = ssub.s32 2048, 2048
          %252 = vsyncadd %s245, %s251
          %s253 = smul.addr %s249, 2
          %s254 = smul.addr %s253, 64
          %s255 = scalar_lea.hbm %s0, %s254
          %s256 = sshll.u32 %s248, 4
          %s257 = int_to_ptr.vmem [resolvable:$true] %s256
          %262 = dma.hbm_to_vmem [thread:$0]  %s255, 2048, %s257, %s245, 64, 64, 4
        $region40: #{tpu_custom_call.1} parent=35 // pred_fallthru
          _
      $region36: #{tpu_custom_call.1} parent=5 // pred_fallthru
        _
      %p263 = scmp.le.s32.totalorder 1, %s20
      %p264 = scmp.lt.s32.totalorder %s20, 5
      %p265 = pnand %p263, %p264
      %p266 = pneg %p265
      // Predicated region
      $region41: #{tpu_custom_call.1} parent=5 // pred_check
        _
      $region42: #{tpu_custom_call.1} parent=5 // pred_check_branch
        %268 = sbr.rel (%p265) target = $region44
      $region43: #{tpu_custom_call.1} parent=5 // pred_region
        %s269 = ssub.s32 %s20, 1
        %s270 = sand.u32 %s33, 1
        %s271 = scalar_lea.sflag [#allocation3], %s270
        %s272 = sand.u32 %s33, 1
        %s273 = smul.addr %s272, 128
        %s274 = scalar_lea.vmem [#allocation2], %s273
        // Predicated region
        $region45: #{tpu_custom_call.1} parent=43 // pred_check
          %p275 = pneg %p46
        $region46: #{tpu_custom_call.1} parent=43 // pred_check_branch
          %277 = sbr.rel (%p275) target = $region48
        $region47: #{tpu_custom_call.1} parent=43 // pred_region
          %278 = dma.done %s271, 2048
        $region48: #{tpu_custom_call.1} parent=43 // pred_fallthru
          _
        // Predicated region
        $region49: #{tpu_custom_call.1} parent=43 // pred_check
          %p279 = pneg %p67
        $region50: #{tpu_custom_call.1} parent=43 // pred_check_branch
          %281 = sbr.rel (%p279) target = $region52
        $region51: #{tpu_custom_call.1} parent=43 // pred_region
          %282 = dma.done [#allocation6], 1024
        $region52: #{tpu_custom_call.1} parent=43 // pred_fallthru
          _
        // Predicated region
        $region53: #{tpu_custom_call.1} parent=43 // pred_check
          %p283 = pneg %p109
        $region54: #{tpu_custom_call.1} parent=43 // pred_check_branch
          %285 = sbr.rel (%p283) target = $region56
        $region55: #{tpu_custom_call.1} parent=43 // pred_region
          %286 = dma.done [#allocation6], 256
        $region56: #{tpu_custom_call.1} parent=43 // pred_fallthru
          _
        // Predicated region
        $region57: #{tpu_custom_call.1} parent=43 // pred_check
          %p287 = pneg %p130
        $region58: #{tpu_custom_call.1} parent=43 // pred_check_branch
          %289 = sbr.rel (%p287) target = $region60
        $region59: #{tpu_custom_call.1} parent=43 // pred_region
          %290 = dma.done [#allocation9], 1024
        $region60: #{tpu_custom_call.1} parent=43 // pred_fallthru
          _
        %s291 = sand.u32 %s33, 1
        %s292 = scalar_lea.sflag [#allocation3], %s291
        %s293 = sand.u32 %s33, 1
        %s294 = smul.addr %s293, 128
        %s295 = scalar_lea.vmem [#allocation2], %s294
        %p296 = pneg %p46
        %p297 = pneg %p43
        %p298 = pneg %p67
        %p299 = pneg %p64
        %p300 = pneg %p88
        %p301 = pneg %p85
        %p302 = pneg %p109
        %p303 = pneg %p106
        %p304 = pneg %p130
        %p305 = pneg %p127
        %p306 = pneg %p151
        %p307 = pneg %p148
        %p308 = pneg %p177
        %p309 = pneg %p174
        %s310 = sand.u32 %s164, 1
        %s311 = scalar_lea.sflag [#allocation4], %s310
        %s312 = sand.u32 %s164, 1
        %s313 = smul.addr %s312, 16
        %s314 = scalar_lea.vmem [#allocation10], %s313
        %s315 = smul.u32 16, %s25
        %s316 = smul.u32 2, %s25
        %v318 = vld [vmem:[%s274] sm:$0xf]
        %v319 = vld [vmem:[%s274 + $0x4] sm:$0xf]
        %v320 = vld [vmem:[%s274 + $0x8] sm:$0xf]
        %v321 = vld [vmem:[%s274 + $0xc] sm:$0xf]
        %v322 = vld [vmem:[%s274 + $0x10] sm:$0xf]
        %v323 = vld [vmem:[%s274 + $0x14] sm:$0xf]
        %v324 = vld [vmem:[%s274 + $0x18] sm:$0xf]
        %v325 = vld [vmem:[%s274 + $0x1c] sm:$0xf]
        %v326 = vld [vmem:[%s274 + $0x20] sm:$0xf]
        %v327 = vld [vmem:[%s274 + $0x24] sm:$0xf]
        %v328 = vld [vmem:[%s274 + $0x28] sm:$0xf]
        %v329 = vld [vmem:[%s274 + $0x2c] sm:$0xf]
        %v330 = vld [vmem:[%s274 + $0x30] sm:$0xf]
        %v331 = vld [vmem:[%s274 + $0x34] sm:$0xf]
        %v332 = vld [vmem:[%s274 + $0x38] sm:$0xf]
        %v333 = vld [vmem:[%s274 + $0x3c] sm:$0xf]
        %v334 = vld [vmem:[%s274 + $0x40] sm:$0xf]
        %v335 = vld [vmem:[%s274 + $0x44] sm:$0xf]
        %v336 = vld [vmem:[%s274 + $0x48] sm:$0xf]
        %v337 = vld [vmem:[%s274 + $0x4c] sm:$0xf]
        %v338 = vld [vmem:[%s274 + $0x50] sm:$0xf]
        %v339 = vld [vmem:[%s274 + $0x54] sm:$0xf]
        %v340 = vld [vmem:[%s274 + $0x58] sm:$0xf]
        %v341 = vld [vmem:[%s274 + $0x5c] sm:$0xf]
        %v342 = vld [vmem:[%s274 + $0x60] sm:$0xf]
        %v343 = vld [vmem:[%s274 + $0x64] sm:$0xf]
        %v344 = vld [vmem:[%s274 + $0x68] sm:$0xf]
        %v345 = vld [vmem:[%s274 + $0x6c] sm:$0xf]
        %v346 = vld [vmem:[%s274 + $0x70] sm:$0xf]
        %v347 = vld [vmem:[%s274 + $0x74] sm:$0xf]
        %v348 = vld [vmem:[%s274 + $0x78] sm:$0xf]
        %v349 = vld [vmem:[%s274 + $0x7c] sm:$0xf]
        %v350 = vld [vmem:[#allocation5] sm:$0xf]
        %v351 = vld [vmem:[#allocation5 + $0x4] sm:$0xf]
        %v352 = vld [vmem:[#allocation5 + $0x8] sm:$0xf]
        %v353 = vld [vmem:[#allocation5 + $0xc] sm:$0xf]
        %v354 = vld [vmem:[#allocation5 + $0x10] sm:$0xf]
        %v355 = vld [vmem:[#allocation5 + $0x14] sm:$0xf]
        %v356 = vld [vmem:[#allocation5 + $0x18] sm:$0xf]
        %v357 = vld [vmem:[#allocation5 + $0x1c] sm:$0xf]
        %v358 = vld [vmem:[#allocation5 + $0x20] sm:$0xf]
        %v359 = vld [vmem:[#allocation5 + $0x24] sm:$0xf]
        %v360 = vld [vmem:[#allocation5 + $0x28] sm:$0xf]
        %v361 = vld [vmem:[#allocation5 + $0x2c] sm:$0xf]
        %v362 = vld [vmem:[#allocation5 + $0x30] sm:$0xf]
        %v363 = vld [vmem:[#allocation5 + $0x34] sm:$0xf]
        %v364 = vld [vmem:[#allocation5 + $0x38] sm:$0xf]
        %v365 = vld [vmem:[#allocation5 + $0x3c] sm:$0xf]
        %v398 = vunpack.c.l.b16 %v318
        %v399 = vunpack.c.l.b16 %v319
        %v400 = vunpack.c.l.b16 %v320
        %v401 = vunpack.c.l.b16 %v321
        %v402 = vunpack.c.l.b16 %v322
        %v403 = vunpack.c.l.b16 %v323
        %v404 = vunpack.c.l.b16 %v324
        %v405 = vunpack.c.l.b16 %v325
        %v406 = vunpack.c.l.b16 %v326
        %v407 = vunpack.c.l.b16 %v327
        %v408 = vunpack.c.l.b16 %v328
        %v409 = vunpack.c.l.b16 %v329
        %v410 = vunpack.c.l.b16 %v330
        %v411 = vunpack.c.l.b16 %v331
        %v412 = vunpack.c.l.b16 %v332
        %v413 = vunpack.c.l.b16 %v333
        %v414 = vunpack.c.l.b16 %v334
        %v415 = vunpack.c.l.b16 %v335
        %v416 = vunpack.c.l.b16 %v336
        %v417 = vunpack.c.l.b16 %v337
        %v418 = vunpack.c.l.b16 %v338
        %v419 = vunpack.c.l.b16 %v339
        %v420 = vunpack.c.l.b16 %v340
        %v421 = vunpack.c.l.b16 %v341
        %v422 = vunpack.c.l.b16 %v342
        %v423 = vunpack.c.l.b16 %v343
        %v424 = vunpack.c.l.b16 %v344
        %v425 = vunpack.c.l.b16 %v345
        %v426 = vunpack.c.l.b16 %v346
        %v427 = vunpack.c.l.b16 %v347
        %v428 = vunpack.c.l.b16 %v348
        %v429 = vunpack.c.l.b16 %v349
        %v430 = vpack.c.b16 %v399, %v398
        %v431 = vpack.c.b16 %v401, %v400
        %v432 = vpack.c.b16 %v403, %v402
        %v433 = vpack.c.b16 %v405, %v404
        %v434 = vpack.c.b16 %v407, %v406
        %v435 = vpack.c.b16 %v409, %v408
        %v436 = vpack.c.b16 %v411, %v410
        %v437 = vpack.c.b16 %v413, %v412
        %v438 = vpack.c.b16 %v415, %v414
        %v439 = vpack.c.b16 %v417, %v416
        %v440 = vpack.c.b16 %v419, %v418
        %v441 = vpack.c.b16 %v421, %v420
        %v442 = vpack.c.b16 %v423, %v422
        %v443 = vpack.c.b16 %v425, %v424
        %v444 = vpack.c.b16 %v427, %v426
        %v445 = vpack.c.b16 %v429, %v428
        %v478 = vunpack.c.l.b16 %v350
        %v479 = vunpack.c.l.b16 %v351
        %v480 = vunpack.c.l.b16 %v352
        %v481 = vunpack.c.l.b16 %v353
        %v482 = vunpack.c.l.b16 %v354
        %v483 = vunpack.c.l.b16 %v355
        %v484 = vunpack.c.l.b16 %v356
        %v485 = vunpack.c.l.b16 %v357
        %v486 = vunpack.c.l.b16 %v358
        %v487 = vunpack.c.l.b16 %v359
        %v488 = vunpack.c.l.b16 %v360
        %v489 = vunpack.c.l.b16 %v361
        %v490 = vunpack.c.l.b16 %v362
        %v491 = vunpack.c.l.b16 %v363
        %v492 = vunpack.c.l.b16 %v364
        %v493 = vunpack.c.l.b16 %v365
        %v494 = vpack.c.b16 %v479, %v478
        %v495 = vpack.c.b16 %v481, %v480
        %v496 = vpack.c.b16 %v483, %v482
        %v497 = vpack.c.b16 %v485, %v484
        %v498 = vpack.c.b16 %v487, %v486
        %v499 = vpack.c.b16 %v489, %v488
        %v500 = vpack.c.b16 %v491, %v490
        %v501 = vpack.c.b16 %v493, %v492
        %510 = vmatprep.subr.bf16.mxu0 0
        %511 = vmatpush1.bf16.msra.mxu0 %v494
        %512 = vmatprep.subr.bf16.mxu0 0
        %513 = vmatpush1.bf16.msra.mxu0 %v495
        %514 = vmatprep.subr.bf16.mxu0 0
        %515 = vmatpush1.bf16.msra.mxu0 %v496
        %516 = vmatprep.subr.bf16.mxu0 0
        %517 = vmatpush1.bf16.msra.mxu0 %v497
        %518 = vmatprep.subr.bf16.mxu0 0
        %519 = vmatpush1.bf16.msra.mxu0 %v498
        %520 = vmatprep.subr.bf16.mxu0 0
        %521 = vmatpush1.bf16.msra.mxu0 %v499
        %522 = vmatprep.subr.bf16.mxu0 0
        %523 = vmatpush1.bf16.msra.mxu0 %v500
        %524 = vmatprep.subr.bf16.mxu0 0
        %525 = vmatpush1.bf16.msra.mxu0 %v501
        %526 = vmatprep.subr.bf16.mxu0 0
        %527 = vmatpush1.bf16.msra.mxu0 0
        %528 = vmatprep.subr.bf16.mxu0 0
        %529 = vmatpush1.bf16.msra.mxu0 0
        %530 = vmatprep.subr.bf16.mxu0 0
        %531 = vmatpush1.bf16.msra.mxu0 0
        %532 = vmatprep.subr.bf16.mxu0 0
        %533 = vmatpush1.bf16.msra.mxu0 0
        %534 = vmatprep.subr.bf16.mxu0 0
        %535 = vmatpush1.bf16.msra.mxu0 0
        %536 = vmatprep.subr.bf16.mxu0 0
        %537 = vmatpush1.bf16.msra.mxu0 0
        %538 = vmatprep.subr.bf16.mxu0 0
        %539 = vmatpush1.bf16.msra.mxu0 0
        %540 = vmatprep.subr.bf16.mxu0 0
        %541 = vmatpush1.bf16.msra.mxu0 0
        %542 = vmatprep.mubr.bf16.mxu0 0
        %543 = vmatmul.mubr.bf16.gmra.mrb[0].mxu0 %v430
        %v544 = vpop.f32.mrb[0].mxu0
        %v545 = vadd.f32 0.0, %v544
        %v546 = vpop.f32.mrb[0].mxu0
        %v547 = vpop.f32.mrb[0].mxu0
        %v548 = vadd.f32 0.0, %v547
        %v549 = vpop.f32.mrb[0].mxu0
        %550 = vmatprep.mubr.bf16.mxu0 0
        %551 = vmatmul.mubr.bf16.gmra.mrb[0].mxu0 %v431
        %v552 = vpop.f32.mrb[0].mxu0
        %v553 = vadd.f32 0.0, %v552
        %v554 = vpop.f32.mrb[0].mxu0
        %v555 = vpop.f32.mrb[0].mxu0
        %v556 = vadd.f32 0.0, %v555
        %v557 = vpop.f32.mrb[0].mxu0
        %558 = vmatprep.mubr.bf16.mxu0 0
        %559 = vmatmul.mubr.bf16.gmra.mrb[0].mxu0 %v432
        %v560 = vpop.f32.mrb[0].mxu0
        %v561 = vadd.f32 0.0, %v560
        %v562 = vpop.f32.mrb[0].mxu0
        %v563 = vpop.f32.mrb[0].mxu0
        %v564 = vadd.f32 0.0, %v563
        %v565 = vpop.f32.mrb[0].mxu0
        %566 = vmatprep.mubr.bf16.mxu0 0
        %567 = vmatmul.mubr.bf16.gmra.mrb[0].mxu0 %v433
        %v568 = vpop.f32.mrb[0].mxu0
        %v569 = vadd.f32 0.0, %v568
        %v570 = vpop.f32.mrb[0].mxu0
        %v571 = vpop.f32.mrb[0].mxu0
        %v572 = vadd.f32 0.0, %v571
        %v573 = vpop.f32.mrb[0].mxu0
        %574 = vmatprep.mubr.bf16.mxu0 0
        %575 = vmatmul.mubr.bf16.gmra.mrb[0].mxu0 %v434
        %v576 = vpop.f32.mrb[0].mxu0
        %v577 = vadd.f32 0.0, %v576
        %v578 = vpop.f32.mrb[0].mxu0
        %v579 = vpop.f32.mrb[0].mxu0
        %v580 = vadd.f32 0.0, %v579
        %v581 = vpop.f32.mrb[0].mxu0
        %582 = vmatprep.mubr.bf16.mxu0 0
        %583 = vmatmul.mubr.bf16.gmra.mrb[0].mxu0 %v435
        %v584 = vpop.f32.mrb[0].mxu0
        %v585 = vadd.f32 0.0, %v584
        %v586 = vpop.f32.mrb[0].mxu0
        %v587 = vpop.f32.mrb[0].mxu0
        %v588 = vadd.f32 0.0, %v587
        %v589 = vpop.f32.mrb[0].mxu0
        %590 = vmatprep.mubr.bf16.mxu0 0
        %591 = vmatmul.mubr.bf16.gmra.mrb[0].mxu0 %v436
        %v592 = vpop.f32.mrb[0].mxu0
        %v593 = vadd.f32 0.0, %v592
        %v594 = vpop.f32.mrb[0].mxu0
        %v595 = vpop.f32.mrb[0].mxu0
        %v596 = vadd.f32 0.0, %v595
        %v597 = vpop.f32.mrb[0].mxu0
        %598 = vmatprep.mubr.bf16.mxu0 0
        %599 = vmatmul.mubr.bf16.gmra.mrb[0].mxu0 %v437
        %v600 = vpop.f32.mrb[0].mxu0
        %v601 = vadd.f32 0.0, %v600
        %v602 = vpop.f32.mrb[0].mxu0
        %v603 = vpop.f32.mrb[0].mxu0
        %v604 = vadd.f32 0.0, %v603
        %v605 = vpop.f32.mrb[0].mxu0
        %606 = vmatprep.mubr.bf16.mxu0 0
        %607 = vmatmul.mubr.bf16.gmra.mrb[0].mxu0 %v438
        %v608 = vpop.f32.mrb[0].mxu0
        %v609 = vadd.f32 0.0, %v608
        %v610 = vpop.f32.mrb[0].mxu0
        %v611 = vpop.f32.mrb[0].mxu0
        %v612 = vadd.f32 0.0, %v611
        %v613 = vpop.f32.mrb[0].mxu0
        %614 = vmatprep.mubr.bf16.mxu0 0
        %615 = vmatmul.mubr.bf16.gmra.mrb[0].mxu0 %v439
        %v616 = vpop.f32.mrb[0].mxu0
        %v617 = vadd.f32 0.0, %v616
        %v618 = vpop.f32.mrb[0].mxu0
        %v619 = vpop.f32.mrb[0].mxu0
        %v620 = vadd.f32 0.0, %v619
        %v621 = vpop.f32.mrb[0].mxu0
        %622 = vmatprep.mubr.bf16.mxu0 0
        %623 = vmatmul.mubr.bf16.gmra.mrb[0].mxu0 %v440
        %v624 = vpop.f32.mrb[0].mxu0
        %v625 = vadd.f32 0.0, %v624
        %v626 = vpop.f32.mrb[0].mxu0
        %v627 = vpop.f32.mrb[0].mxu0
        %v628 = vadd.f32 0.0, %v627
        %v629 = vpop.f32.mrb[0].mxu0
        %630 = vmatprep.mubr.bf16.mxu0 0
        %631 = vmatmul.mubr.bf16.gmra.mrb[0].mxu0 %v441
        %v632 = vpop.f32.mrb[0].mxu0
        %v633 = vadd.f32 0.0, %v632
        %v634 = vpop.f32.mrb[0].mxu0
        %v635 = vpop.f32.mrb[0].mxu0
        %v636 = vadd.f32 0.0, %v635
        %v637 = vpop.f32.mrb[0].mxu0
        %638 = vmatprep.mubr.bf16.mxu0 0
        %639 = vmatmul.mubr.bf16.gmra.mrb[0].mxu0 %v442
        %v640 = vpop.f32.mrb[0].mxu0
        %v641 = vadd.f32 0.0, %v640
        %v642 = vpop.f32.mrb[0].mxu0
        %v643 = vpop.f32.mrb[0].mxu0
        %v644 = vadd.f32 0.0, %v643
        %v645 = vpop.f32.mrb[0].mxu0
        %646 = vmatprep.mubr.bf16.mxu0 0
        %647 = vmatmul.mubr.bf16.gmra.mrb[0].mxu0 %v443
        %v648 = vpop.f32.mrb[0].mxu0
        %v649 = vadd.f32 0.0, %v648
        %v650 = vpop.f32.mrb[0].mxu0
        %v651 = vpop.f32.mrb[0].mxu0
        %v652 = vadd.f32 0.0, %v651
        %v653 = vpop.f32.mrb[0].mxu0
        %654 = vmatprep.mubr.bf16.mxu0 0
        %655 = vmatmul.mubr.bf16.gmra.mrb[0].mxu0 %v444
        %v656 = vpop.f32.mrb[0].mxu0
        %v657 = vadd.f32 0.0, %v656
        %v658 = vpop.f32.mrb[0].mxu0
        %v659 = vpop.f32.mrb[0].mxu0
        %v660 = vadd.f32 0.0, %v659
        %v661 = vpop.f32.mrb[0].mxu0
        %662 = vmatprep.mubr.bf16.mxu0 0
        %663 = vmatmul.mubr.bf16.gmra.mrb[0].mxu0 %v445
        %v664 = vpop.f32.mrb[0].mxu0
        %v665 = vadd.f32 0.0, %v664
        %v666 = vpop.f32.mrb[0].mxu0
        %v667 = vpop.f32.mrb[0].mxu0
        %v668 = vadd.f32 0.0, %v667
        %v669 = vpop.f32.mrb[0].mxu0
        %670 = vdwg.mxu0
        %v671 = vld [vmem:[#allocation7] sm:$0xff]
        %v672 = vld [vmem:[#allocation7 + $0x8] sm:$0xff]
        %v673 = vadd.f32 %v545, %v671
        %v674 = vadd.f32 %v548, %v672
        %v675 = vadd.f32 %v553, %v671
        %v676 = vadd.f32 %v556, %v672
        %v677 = vadd.f32 %v561, %v671
        %v678 = vadd.f32 %v564, %v672
        %v679 = vadd.f32 %v569, %v671
        %v680 = vadd.f32 %v572, %v672
        %v681 = vadd.f32 %v577, %v671
        %v682 = vadd.f32 %v580, %v672
        %v683 = vadd.f32 %v585, %v671
        %v684 = vadd.f32 %v588, %v672
        %v685 = vadd.f32 %v593, %v671
        %v686 = vadd.f32 %v596, %v672
        %v687 = vadd.f32 %v601, %v671
        %v688 = vadd.f32 %v604, %v672
        %v689 = vadd.f32 %v609, %v671
        %v690 = vadd.f32 %v612, %v672
        %v691 = vadd.f32 %v617, %v671
        %v692 = vadd.f32 %v620, %v672
        %v693 = vadd.f32 %v625, %v671
        %v694 = vadd.f32 %v628, %v672
        %v695 = vadd.f32 %v633, %v671
        %v696 = vadd.f32 %v636, %v672
        %v697 = vadd.f32 %v641, %v671
        %v698 = vadd.f32 %v644, %v672
        %v699 = vadd.f32 %v649, %v671
        %v700 = vadd.f32 %v652, %v672
        %v701 = vadd.f32 %v657, %v671
        %v702 = vadd.f32 %v660, %v672
        %v703 = vadd.f32 %v665, %v671
        %v704 = vadd.f32 %v668, %v672
        %v705 = vmax.f32 %v673, %v674
        %v706 = vrot.slane %v705, 4
        %v707 = vmax.f32 %v705, %v706
        %v708 = vrot.slane %v707, 2
        %v709 = vmax.f32 %v707, %v708
        %v710 = vrot.slane %v709, 1
        %v711 = vmax.f32 %v709, %v710
        %v712 = vmax.f32 %v675, %v676
        %v713 = vrot.slane %v712, 4
        %v714 = vmax.f32 %v712, %v713
        %v715 = vrot.slane %v714, 2
        %v716 = vmax.f32 %v714, %v715
        %v717 = vrot.slane %v716, 1
        %v718 = vmax.f32 %v716, %v717
        %v719 = vmax.f32 %v677, %v678
        %v720 = vrot.slane %v719, 4
        %v721 = vmax.f32 %v719, %v720
        %v722 = vrot.slane %v721, 2
        %v723 = vmax.f32 %v721, %v722
        %v724 = vrot.slane %v723, 1
        %v725 = vmax.f32 %v723, %v724
        %v726 = vmax.f32 %v679, %v680
        %v727 = vrot.slane %v726, 4
        %v728 = vmax.f32 %v726, %v727
        %v729 = vrot.slane %v728, 2
        %v730 = vmax.f32 %v728, %v729
        %v731 = vrot.slane %v730, 1
        %v732 = vmax.f32 %v730, %v731
        %v733 = vmax.f32 %v681, %v682
        %v734 = vrot.slane %v733, 4
        %v735 = vmax.f32 %v733, %v734
        %v736 = vrot.slane %v735, 2
        %v737 = vmax.f32 %v735, %v736
        %v738 = vrot.slane %v737, 1
        %v739 = vmax.f32 %v737, %v738
        %v740 = vmax.f32 %v683, %v684
        %v741 = vrot.slane %v740, 4
        %v742 = vmax.f32 %v740, %v741
        %v743 = vrot.slane %v742, 2
        %v744 = vmax.f32 %v742, %v743
        %v745 = vrot.slane %v744, 1
        %v746 = vmax.f32 %v744, %v745
        %v747 = vmax.f32 %v685, %v686
        %v748 = vrot.slane %v747, 4
        %v749 = vmax.f32 %v747, %v748
        %v750 = vrot.slane %v749, 2
        %v751 = vmax.f32 %v749, %v750
        %v752 = vrot.slane %v751, 1
        %v753 = vmax.f32 %v751, %v752
        %v754 = vmax.f32 %v687, %v688
        %v755 = vrot.slane %v754, 4
        %v756 = vmax.f32 %v754, %v755
        %v757 = vrot.slane %v756, 2
        %v758 = vmax.f32 %v756, %v757
        %v759 = vrot.slane %v758, 1
        %v760 = vmax.f32 %v758, %v759
        %v761 = vmax.f32 %v689, %v690
        %v762 = vrot.slane %v761, 4
        %v763 = vmax.f32 %v761, %v762
        %v764 = vrot.slane %v763, 2
        %v765 = vmax.f32 %v763, %v764
        %v766 = vrot.slane %v765, 1
        %v767 = vmax.f32 %v765, %v766
        %v768 = vmax.f32 %v691, %v692
        %v769 = vrot.slane %v768, 4
        %v770 = vmax.f32 %v768, %v769
        %v771 = vrot.slane %v770, 2
        %v772 = vmax.f32 %v770, %v771
        %v773 = vrot.slane %v772, 1
        %v774 = vmax.f32 %v772, %v773
        %v775 = vmax.f32 %v693, %v694
        %v776 = vrot.slane %v775, 4
        %v777 = vmax.f32 %v775, %v776
        %v778 = vrot.slane %v777, 2
        %v779 = vmax.f32 %v777, %v778
        %v780 = vrot.slane %v779, 1
        %v781 = vmax.f32 %v779, %v780
        %v782 = vmax.f32 %v695, %v696
        %v783 = vrot.slane %v782, 4
        %v784 = vmax.f32 %v782, %v783
        %v785 = vrot.slane %v784, 2
        %v786 = vmax.f32 %v784, %v785
        %v787 = vrot.slane %v786, 1
        %v788 = vmax.f32 %v786, %v787
        %v789 = vmax.f32 %v697, %v698
        %v790 = vrot.slane %v789, 4
        %v791 = vmax.f32 %v789, %v790
        %v792 = vrot.slane %v791, 2
        %v793 = vmax.f32 %v791, %v792
        %v794 = vrot.slane %v793, 1
        %v795 = vmax.f32 %v793, %v794
        %v796 = vmax.f32 %v699, %v700
        %v797 = vrot.slane %v796, 4
        %v798 = vmax.f32 %v796, %v797
        %v799 = vrot.slane %v798, 2
        %v800 = vmax.f32 %v798, %v799
        %v801 = vrot.slane %v800, 1
        %v802 = vmax.f32 %v800, %v801
        %v803 = vmax.f32 %v701, %v702
        %v804 = vrot.slane %v803, 4
        %v805 = vmax.f32 %v803, %v804
        %v806 = vrot.slane %v805, 2
        %v807 = vmax.f32 %v805, %v806
        %v808 = vrot.slane %v807, 1
        %v809 = vmax.f32 %v807, %v808
        %v810 = vmax.f32 %v703, %v704
        %v811 = vrot.slane %v810, 4
        %v812 = vmax.f32 %v810, %v811
        %v813 = vrot.slane %v812, 2
        %v814 = vmax.f32 %v812, %v813
        %v815 = vrot.slane %v814, 1
        %v816 = vmax.f32 %v814, %v815
        %v817 = vld [vmem:[%s2] sm:$0x1]
        %v819 = vlaneseq
        %v820 = vshrl.u32 %v819, 7
        %v821 = vsub.s32 0, %v820
        %v822 = vrot.slane %v817, %v821
        %v824 = vadd.f32 %v711, %v822
        %v825 = vadd.f32 %v718, %v822
        %v826 = vadd.f32 %v725, %v822
        %v827 = vadd.f32 %v732, %v822
        %v828 = vadd.f32 %v739, %v822
        %v829 = vadd.f32 %v746, %v822
        %v830 = vadd.f32 %v753, %v822
        %v831 = vadd.f32 %v760, %v822
        %v832 = vadd.f32 %v767, %v822
        %v833 = vadd.f32 %v774, %v822
        %v834 = vadd.f32 %v781, %v822
        %v835 = vadd.f32 %v788, %v822
        %v836 = vadd.f32 %v795, %v822
        %v837 = vadd.f32 %v802, %v822
        %v838 = vadd.f32 %v809, %v822
        %v839 = vadd.f32 %v816, %v822
        %v840 = vmax.f32 %v824, 0.0
        %v841 = vmax.f32 %v825, 0.0
        %v842 = vmax.f32 %v826, 0.0
        %v843 = vmax.f32 %v827, 0.0
        %v844 = vmax.f32 %v828, 0.0
        %v845 = vmax.f32 %v829, 0.0
        %v846 = vmax.f32 %v830, 0.0
        %v847 = vmax.f32 %v831, 0.0
        %v848 = vmax.f32 %v832, 0.0
        %v849 = vmax.f32 %v833, 0.0
        %v850 = vmax.f32 %v834, 0.0
        %v851 = vmax.f32 %v835, 0.0
        %v852 = vmax.f32 %v836, 0.0
        %v853 = vmax.f32 %v837, 0.0
        %v854 = vmax.f32 %v838, 0.0
        %v855 = vmax.f32 %v839, 0.0
        %v856 = vpack.c.bf16 %v840, %v840
        %v857 = vpack.c.bf16 %v841, %v841
        %v858 = vpack.c.bf16 %v842, %v842
        %v859 = vpack.c.bf16 %v843, %v843
        %v860 = vpack.c.bf16 %v844, %v844
        %v861 = vpack.c.bf16 %v845, %v845
        %v862 = vpack.c.bf16 %v846, %v846
        %v863 = vpack.c.bf16 %v847, %v847
        %v864 = vpack.c.bf16 %v848, %v848
        %v865 = vpack.c.bf16 %v849, %v849
        %v866 = vpack.c.bf16 %v850, %v850
        %v867 = vpack.c.bf16 %v851, %v851
        %v868 = vpack.c.bf16 %v852, %v852
        %v869 = vpack.c.bf16 %v853, %v853
        %v870 = vpack.c.bf16 %v854, %v854
        %v871 = vpack.c.bf16 %v855, %v855
        %v872 = vld [vmem:[#allocation8] sm:$0xf]
        %v873 = vld [vmem:[#allocation8 + $0x4] sm:$0xf]
        %v874 = vld [vmem:[#allocation8 + $0x8] sm:$0xf]
        %v875 = vld [vmem:[#allocation8 + $0xc] sm:$0xf]
        %v876 = vld [vmem:[#allocation8 + $0x10] sm:$0xf]
        %v877 = vld [vmem:[#allocation8 + $0x14] sm:$0xf]
        %v878 = vld [vmem:[#allocation8 + $0x18] sm:$0xf]
        %v879 = vld [vmem:[#allocation8 + $0x1c] sm:$0xf]
        %v880 = vld [vmem:[#allocation8 + $0x20] sm:$0xf]
        %v881 = vld [vmem:[#allocation8 + $0x24] sm:$0xf]
        %v882 = vld [vmem:[#allocation8 + $0x28] sm:$0xf]
        %v883 = vld [vmem:[#allocation8 + $0x2c] sm:$0xf]
        %v884 = vld [vmem:[#allocation8 + $0x30] sm:$0xf]
        %v885 = vld [vmem:[#allocation8 + $0x34] sm:$0xf]
        %v886 = vld [vmem:[#allocation8 + $0x38] sm:$0xf]
        %v887 = vld [vmem:[#allocation8 + $0x3c] sm:$0xf]
        %v888 = vld [vmem:[%s5] sm:$0x1]
        %v890 = vlaneseq
        %v891 = vshrl.u32 %v890, 7
        %v892 = vsub.s32 0, %v891
        %v893 = vrot.slane %v888, %v892
        %v911 = vunpack.c.l.b16 %v856
        %v912 = vunpack.c.l.b16 %v857
        %v913 = vunpack.c.l.b16 %v858
        %v914 = vunpack.c.l.b16 %v859
        %v915 = vunpack.c.l.b16 %v860
        %v916 = vunpack.c.l.b16 %v861
        %v917 = vunpack.c.l.b16 %v862
        %v918 = vunpack.c.l.b16 %v863
        %v919 = vunpack.c.l.b16 %v864
        %v920 = vunpack.c.l.b16 %v865
        %v921 = vunpack.c.l.b16 %v866
        %v922 = vunpack.c.l.b16 %v867
        %v923 = vunpack.c.l.b16 %v868
        %v924 = vunpack.c.l.b16 %v869
        %v925 = vunpack.c.l.b16 %v870
        %v926 = vunpack.c.l.b16 %v871
        %v927 = vrot.slane %v912, 7
        %vm928 = vcmask 1041409
        %v929 = vsel %vm928, %v927, %v911
        %v930 = vrot.slane %v913, 6
        %vm931 = vcmask 1042434
        %v932 = vsel %vm931, %v930, %v929
        %v933 = vrot.slane %v914, 5
        %vm934 = vcmask 1043459
        %v935 = vsel %vm934, %v933, %v932
        %v936 = vrot.slane %v915, 4
        %vm937 = vcmask 1044484
        %v938 = vsel %vm937, %v936, %v935
        %v939 = vrot.slane %v916, 3
        %vm940 = vcmask 1045509
        %v941 = vsel %vm940, %v939, %v938
        %v942 = vrot.slane %v917, 2
        %vm943 = vcmask 1046534
        %v944 = vsel %vm943, %v942, %v941
        %v945 = vrot.slane %v918, 1
        %vm946 = vcmask 1047559
        %v947 = vsel %vm946, %v945, %v944
        %v948 = vrot.slane %v920, 7
        %v949 = vsel %vm928, %v948, %v919
        %v950 = vrot.slane %v921, 6
        %v951 = vsel %vm931, %v950, %v949
        %v952 = vrot.slane %v922, 5
        %v953 = vsel %vm934, %v952, %v951
        %v954 = vrot.slane %v923, 4
        %v955 = vsel %vm937, %v954, %v953
        %v956 = vrot.slane %v924, 3
        %v957 = vsel %vm940, %v956, %v955
        %v958 = vrot.slane %v925, 2
        %v959 = vsel %vm943, %v958, %v957
        %v960 = vrot.slane %v926, 1
        %v961 = vsel %vm946, %v960, %v959
        %v962 = vpack.c.b16 %v961, %v947
        %v980 = vunpack.c.l.b16 %v872
        %v981 = vunpack.c.l.b16 %v873
        %v982 = vunpack.c.l.b16 %v874
        %v983 = vunpack.c.l.b16 %v875
        %v984 = vunpack.c.l.b16 %v876
        %v985 = vunpack.c.l.b16 %v877
        %v986 = vunpack.c.l.b16 %v878
        %v987 = vunpack.c.l.b16 %v879
        %v988 = vunpack.c.l.b16 %v880
        %v989 = vunpack.c.l.b16 %v881
        %v990 = vunpack.c.l.b16 %v882
        %v991 = vunpack.c.l.b16 %v883
        %v992 = vunpack.c.l.b16 %v884
        %v993 = vunpack.c.l.b16 %v885
        %v994 = vunpack.c.l.b16 %v886
        %v995 = vunpack.c.l.b16 %v887
        %v996 = vpack.c.b16 %v981, %v980
        %v997 = vpack.c.b16 %v983, %v982
        %v998 = vpack.c.b16 %v985, %v984
        %v999 = vpack.c.b16 %v987, %v986
        %v1000 = vpack.c.b16 %v989, %v988
        %v1001 = vpack.c.b16 %v991, %v990
        %v1002 = vpack.c.b16 %v993, %v992
        %v1003 = vpack.c.b16 %v995, %v994
        %1012 = vmatprep.subr.bf16.mxu0 0
        %1013 = vmatpush1.bf16.msra.mxu0 %v996
        %1014 = vmatprep.subr.bf16.mxu0 0
        %1015 = vmatpush1.bf16.msra.mxu0 %v997
        %1016 = vmatprep.subr.bf16.mxu0 0
        %1017 = vmatpush1.bf16.msra.mxu0 %v998
        %1018 = vmatprep.subr.bf16.mxu0 0
        %1019 = vmatpush1.bf16.msra.mxu0 %v999
        %1020 = vmatprep.subr.bf16.mxu0 0
        %1021 = vmatpush1.bf16.msra.mxu0 %v1000
        %1022 = vmatprep.subr.bf16.mxu0 0
        %1023 = vmatpush1.bf16.msra.mxu0 %v1001
        %1024 = vmatprep.subr.bf16.mxu0 0
        %1025 = vmatpush1.bf16.msra.mxu0 %v1002
        %1026 = vmatprep.subr.bf16.mxu0 0
        %1027 = vmatpush1.bf16.msra.mxu0 %v1003
        %1028 = vmatprep.subr.bf16.mxu0 0
        %1029 = vmatpush1.bf16.msra.mxu0 0
        %1030 = vmatprep.subr.bf16.mxu0 0
        %1031 = vmatpush1.bf16.msra.mxu0 0
        %1032 = vmatprep.subr.bf16.mxu0 0
        %1033 = vmatpush1.bf16.msra.mxu0 0
        %1034 = vmatprep.subr.bf16.mxu0 0
        %1035 = vmatpush1.bf16.msra.mxu0 0
        %1036 = vmatprep.subr.bf16.mxu0 0
        %1037 = vmatpush1.bf16.msra.mxu0 0
        %1038 = vmatprep.subr.bf16.mxu0 0
        %1039 = vmatpush1.bf16.msra.mxu0 0
        %1040 = vmatprep.subr.bf16.mxu0 0
        %1041 = vmatpush1.bf16.msra.mxu0 0
        %1042 = vmatprep.subr.bf16.mxu0 0
        %1043 = vmatpush1.bf16.msra.mxu0 0
        %1044 = vmatprep.mubr.bf16.mxu0 0
        %1045 = vmatmul.mubr.bf16.gmra.mrb[0].mxu0 %v962
        %v1046 = vpop.f32.mrb[0].mxu0
        %v1047 = vadd.f32 %v893, %v1046
        %v1048 = vpop.f32.mrb[0].mxu0
        %v1049 = vpop.f32.mrb[0].mxu0
        %v1050 = vadd.f32 %v893, %v1049
        %v1051 = vpop.f32.mrb[0].mxu0
        %1052 = vdwg.mxu0
        %1053 = vst [vmem:[%s314] sm:$0xff] %v1047
        %1054 = vst [vmem:[%s314 + $0x8] sm:$0xff] %v1050
        %s1055 = sand.u32 %s164, 1
        %s1056 = scalar_lea.sflag [#allocation4], %s1055
        %s1057 = sand.u32 %s164, 1
        %s1058 = smul.addr %s1057, 16
        %s1059 = scalar_lea.vmem [#allocation10], %s1058
        // Predicated region
        $region61: #{tpu_custom_call.1} parent=43 // pred_check
          %p1060 = pneg %p174
        $region62: #{tpu_custom_call.1} parent=43 // pred_check_branch
          %1062 = sbr.rel (%p1060) target = $region64
        $region63: #{tpu_custom_call.1} parent=43 // pred_region
          %s1063 = smul.u32 2, %s25
          %s1065 = ssub.s32 256, 256
          %1066 = vsyncadd %s1056, %s1065
          %s1067 = smul.addr %s1063, 128
          %s1068 = scalar_lea.hbm %s6, %s1067
          %s1069 = sshll.u32 %s1059, 4
          %s1070 = int_to_ptr.vmem [resolvable:$true] %s1069
          %1075 = dma.vmem_to_hbm [thread:$0]  %s1070, 256, %s1068, %s1056, 128, 128, 8
        $region64: #{tpu_custom_call.1} parent=43 // pred_fallthru
          _
      $region44: #{tpu_custom_call.1} parent=5 // pred_fallthru
        _
      %p1076 = scmp.le.s32.totalorder 2, %s20
      // Predicated region
      $region65: #{tpu_custom_call.1} parent=5 // pred_check
        %p1077 = pneg %p1076
      $region66: #{tpu_custom_call.1} parent=5 // pred_check_branch
        %1079 = sbr.rel (%p1077) target = $region68
      $region67: #{tpu_custom_call.1} parent=5 // pred_region
        %s1080 = ssub.s32 %s20, 2
        // Predicated region
        $region69: #{tpu_custom_call.1} parent=67 // pred_check
          %p1081 = pneg %p180
        $region70: #{tpu_custom_call.1} parent=67 // pred_check_branch
          %1083 = sbr.rel (%p1081) target = $region72
        $region71: #{tpu_custom_call.1} parent=67 // pred_region
          %s1084 = sand.u32 %s165, 1
          %s1085 = scalar_lea.sflag [#allocation4], %s1084
          %s1086 = sand.u32 %s165, 1
          %s1087 = smul.addr %s1086, 16
          %s1088 = scalar_lea.vmem [#allocation10], %s1087
          %1089 = dma.done %s1085, 256
        $region72: #{tpu_custom_call.1} parent=67 // pred_fallthru
          _
      $region68: #{tpu_custom_call.1} parent=5 // pred_fallthru
        _
    $region6: #{tpu_custom_call.1} parent=1 // loop_footer
      %s24 = sadd.s32 1, %s20
    $region7: #{tpu_custom_call.1} parent=1 // loop_footer_branch
      %19 = sbr.rel target = $region3
    $region8: #{tpu_custom_call.1} parent=1 // loop_exit
      _
    %1090 = vsyncpa [#allocation3], 1
    %s1091 = scalar_lea.sflag [#allocation3], 1
    %1092 = vsyncpa %s1091, 1
    %1093 = vsyncpa [#allocation6], 1
    %1094 = vsyncpa [#allocation9], 1
    %1095 = vsyncpa [#allocation4], 1
    %s1096 = scalar_lea.sflag [#allocation4], 1
    %1097 = vsyncpa %s1096, 1

</llo_original>
